<compile_context>
chip_gen: v5e
topology: v5e:2x2
jax: 0.10.0
libtpu: 0.0.40
codegen_flags: <defaults>
</compile_context>

<pallas_src>
import math

import jax
import jax.numpy as jnp
from jax import lax
from jax.experimental import pallas as pl
from jax.experimental.pallas import tpu as pltpu

NUM_GROUPS = 32
EPS = 1e-5
NUM_LANES = 128


# ---------------------------------------------------------------------------
# Helpers
# ---------------------------------------------------------------------------
def _vmem_limit_bytes():
    """Generation-aware scoped-VMEM limit: ~85% of physical, capped below 128 MiB.
    Falls back to 64 MiB (safe on every generation, incl. v7x) if the query fails."""
    default = 64 * 1024 * 1024
    try:
        cap = getattr(pltpu.get_tpu_info(), "vmem_capacity_bytes", None)
    except Exception:
        cap = None
    if not cap:
        return default
    return min(int(cap * 0.85), 112 * 1024 * 1024)


def _supports_single_buffering():
    try:
        pl.BlockSpec((8, NUM_LANES), lambda i: (0, 0), pipeline_mode=pl.Buffered(1))
        return True
    except Exception:
        return False


_SINGLE_BUFFER_OK = _supports_single_buffering()


def _spec(block_shape, index_map, *, single_buffer=False):
    """BlockSpec; constant-index / per-batch-resident operands get a single VMEM
    buffer (halves their footprint — matters most on v7x's 64 MiB VMEM)."""
    if single_buffer and _SINGLE_BUFFER_OK:
        return pl.BlockSpec(block_shape, index_map, pipeline_mode=pl.Buffered(1))
    return pl.BlockSpec(block_shape, index_map)


def _pick_tile(hw, target, mult=NUM_LANES):
    """Largest divisor of hw that is <= target and a multiple of `mult` (lane
    aligned); falls back to multiples of 8; never silently returns an oversized tile."""
    target = min(target, hw)
    for m in (mult, 8):
        best = 0
        t = m
        while t <= target:
            if hw % t == 0:
                best = t
            t += m
        if best:
            return best
    if hw <= target:
        return hw          # tiny spatial extents (< 8 positions): use the full axis
    # TODO(synk): pad H*W (with key masking in the attention) for awkward spatial sizes.
    raise ValueError(f"H*W={hw} has no tile <= {target}; pad spatial dims")


# ---------------------------------------------------------------------------
# Kernel 1: GroupNorm statistics -> per-channel scale / shift
# grid = (B, HW//tm); HW axis is a reduction ("arbitrary")
# ---------------------------------------------------------------------------
def _make_gn_stats_kernel(inv_n):
    def kernel(x_ref, gamma_ref, beta_ref, m_ref, mt_ref,
               scale_ref, shift_ref, sx_sc, sx2_sc):
        hi = pl.program_id(1)

        @pl.when(hi == 0)
        def _():
            sx_sc[...] = jnp.zeros_like(sx_sc)
            sx2_sc[...] = jnp.zeros_like(sx2_sc)

        x = x_ref[...]                                             # (tm, C) f32
        sx_sc[...] += jnp.sum(x, axis=0, keepdims=True)            # (1, C)
        sx2_sc[...] += jnp.sum(x * x, axis=0, keepdims=True)       # (1, C)

        @pl.when(hi == pl.num_programs(1) - 1)
        def _():
            M = m_ref[...]                                         # (C, G)
            mean_g = jnp.dot(sx_sc[...], M,
                             preferred_element_type=jnp.float32) * inv_n       # (1, G)
            ex2_g = jnp.dot(sx2_sc[...], M,
                            preferred_element_type=jnp.float32) * inv_n        # (1, G)
            inv_g = lax.rsqrt(ex2_g - mean_g * mean_g + EPS)                    # (1, G)
            MT = mt_ref[...]                                       # (G, C)
            mean_c = jnp.dot(mean_g, MT, preferred_element_type=jnp.float32)   # (1, C)
            inv_c = jnp.dot(inv_g, MT, preferred_element_type=jnp.float32)     # (1, C)
            sc = inv_c * gamma_ref[...]
            scale_ref[...] = sc
            shift_ref[...] = beta_ref[...] - mean_c * sc
    return kernel


# ---------------------------------------------------------------------------
# Kernel 2: normalize + fused QKV projection (K written pre-transposed)
# grid = (B, HW//tm); both axes "parallel"
# ---------------------------------------------------------------------------
def _make_gn_qkv_kernel(C):
    def kernel(x_ref, scale_ref, shift_ref, w_ref, b_ref, q_ref, kT_ref, v_ref):
        # folded GroupNorm: h = x * scale + shift (no mean-centered temporary)
        h = (x_ref[...] * scale_ref[...] + shift_ref[...]).astype(jnp.bfloat16)  # (tm, C)
        qkv = (jnp.dot(h, w_ref[...], preferred_element_type=jnp.float32)
               + b_ref[...])                                                      # (tm, 3C)
        q_ref[...] = qkv[:, :C].astype(jnp.bfloat16)
        # K goes out as (C, tm) so the attention kernel never transposes per kv step.
        kT_ref[...] = jnp.transpose(qkv[:, C:2 * C]).astype(jnp.bfloat16)
        v_ref[...] = qkv[:, 2 * C:].astype(jnp.bfloat16)
    return kernel


# ---------------------------------------------------------------------------
# Kernel 3: flash attention (online softmax) + output projection + residual
# grid = (B, HW//tq, HW//tk); last axis is the kv reduction ("arbitrary")
# ---------------------------------------------------------------------------
def _make_flash_kernel(C, tq, tk, resident):
    k_rep = tk // NUM_LANES if tk % NUM_LANES == 0 else None
    c_rep = C // NUM_LANES if C % NUM_LANES == 0 else None

    def rep_cols(v128, rep):
        # v128: (tq, 128) lane-replicated per-row scalars
        if rep is None:
            return v128[:, :1]              # odd widths: fall back to 1-lane broadcast
        if rep == 1:
            return v128
        return jnp.tile(v128, (1, rep))     # replication of replicated lanes: vreg copies

    def kernel(x_ref, q_ref, kT_ref, v_ref, wp_ref, bp_ref, o_ref,
               m_sc, l_sc, acc_sc):
        ki = pl.program_id(2)

        @pl.when(ki == 0)
        def _():
            m_sc[...] = jnp.full(m_sc.shape, -jnp.inf, jnp.float32)
            l_sc[...] = jnp.zeros(l_sc.shape, jnp.float32)
            acc_sc[...] = jnp.zeros(acc_sc.shape, jnp.float32)

        q = q_ref[...]                                            # (tq, C) bf16
        if resident:
            off = pl.multiple_of(ki * tk, tk)
            kT = kT_ref[:, pl.ds(off, tk)]                        # (C, tk) bf16
            v = v_ref[pl.ds(off, tk), :]                          # (tk, C) bf16
        else:
            kT = kT_ref[...]
            v = v_ref[...]

        # scores in natural MXU orientation (q lanes x kT sublanes contract)
        s = jnp.dot(q, kT, preferred_element_type=jnp.float32)    # (tq, tk) f32

        m_prev = m_sc[...]                                        # (tq, 128) replicated
        l_prev = l_sc[...]
        m_cur = jnp.max(s, axis=-1, keepdims=True)                # (tq, 1)
        m_next = jnp.maximum(m_prev, m_cur)                       # (tq, 128) replicated
        alpha = jnp.exp(m_prev - m_next)                          # (tq, 128)

        p = jnp.exp(s - rep_cols(m_next, k_rep))                  # (tq, tk)
        l_sc[...] = alpha * l_prev + jnp.sum(p, axis=-1, keepdims=True)
        acc_sc[...] = rep_cols(alpha, c_rep) * acc_sc[...] + jnp.dot(
            p.astype(jnp.bfloat16), v, preferred_element_type=jnp.float32)
        m_sc[...] = m_next

        @pl.when(ki == pl.num_programs(2) - 1)
        def _():
            inv_l = pl.reciprocal(l_sc[...], approx=False)        # exact: once per q tile
            att = (acc_sc[...] * rep_cols(inv_l, c_rep)).astype(jnp.bfloat16)
            out = (jnp.dot(att, wp_ref[...], preferred_element_type=jnp.float32)
                   + bp_ref[...])
            o_ref[...] = x_ref[...] + out
    return kernel


# ---------------------------------------------------------------------------
# Wrapper
# ---------------------------------------------------------------------------
def attn_block(x_nchw, params, *, tm=512, tq=512, tk=None, resident_kv=None):
    """x_nchw: (B, C, H, W) float32.  params: GN affine + 1x1 conv weights."""
    B, C, H, W = x_nchw.shape
    assert C % NUM_GROUPS == 0, "GroupNorm(32, C) requires C % 32 == 0"
    HW = H * W
    vmem_limit = _vmem_limit_bytes()

    # Keep K/V resident per batch when even a double-buffered copy fits comfortably.
    kv_bytes = 2 * HW * C * 2                       # K + V in bf16
    if resident_kv is None:
        resident_kv = 2 * kv_bytes <= vmem_limit // 3
    if tk is None:
        # streamed K/V wants bigger kv tiles (HBM re-streaming ~ 1/tq, overhead ~ 1/tk)
        tk = 512 if resident_kv else 1024

    x_seq = jnp.transpose(x_nchw, (0, 2, 3, 1)).reshape(B, HW, C)    # (B, HW, C)

    tm = _pick_tile(HW, tm)
    tq = _pick_tile(HW, tq)
    tk = _pick_tile(HW, tk)
    nm, nq, nk = HW // tm, HW // tq, HW // tk

    gamma = params["gamma"].reshape(1, C).astype(jnp.float32)
    beta = params["beta"].reshape(1, C).astype(jnp.float32)

    # conv weights are (C_out, C_in); kernels want (C_in, C_out).  Fuse Wq|Wk|Wv into one
    # (C, 3C) matmul and fold the softmax scale C^-0.5 into the q columns.
    scl = jnp.float32(int(C) ** (-0.5))
    w_qkv = jnp.concatenate(
        [params["wq"].T * scl, params["wk"].T, params["wv"].T], axis=1
    ).astype(jnp.bfloat16)                                            # (C, 3C)
    b_qkv = jnp.concatenate(
        [params["bq"] * scl, params["bk"], params["bv"]]
    ).reshape(1, 3 * C).astype(jnp.float32)                           # (1, 3C)
    wp = params["wp"].T.astype(jnp.bfloat16)                          # (C, C)
    bp = params["bp"].reshape(1, C).astype(jnp.float32)

    # group-membership matrices (host-built once): channel<->group reduce via tiny matmuls
    cg = C // NUM_GROUPS
    M = (jnp.arange(C)[:, None] // cg == jnp.arange(NUM_GROUPS)[None, :]
         ).astype(jnp.float32)                                        # (C, G)
    MT = M.T                                                          # (G, C)

    def cparams(sem):
        return pltpu.CompilerParams(dimension_semantics=sem,
                                    vmem_limit_bytes=vmem_limit)

    # ---- pass 1: GroupNorm statistics -> per-channel scale / shift ----
    scale_c, shift_c = pl.pallas_call(
        _make_gn_stats_kernel(1.0 / float(HW * cg)),
        out_shape=[jax.ShapeDtypeStruct((B, 1, C), jnp.float32)] * 2,
        grid=(B, nm),
        in_specs=[
            pl.BlockSpec((pl.Squeezed(), tm, C), lambda b, i: (b, i, 0)),      # x
            _spec((1, C), lambda b, i: (0, 0), single_buffer=True),            # gamma
            _spec((1, C), lambda b, i: (0, 0), single_buffer=True),            # beta
            _spec((C, NUM_GROUPS), lambda b, i: (0, 0), single_buffer=True),   # M
            _spec((NUM_GROUPS, C), lambda b, i: (0, 0), single_buffer=True),   # M^T
        ],
        out_specs=[pl.BlockSpec((pl.Squeezed(), 1, C), lambda b, i: (b, 0, 0))] * 2,
        scratch_shapes=[pltpu.VMEM((1, C), jnp.float32),
                        pltpu.VMEM((1, C), jnp.float32)],
        compiler_params=cparams(("parallel", "arbitrary")),
    )(x_seq, gamma, beta, M, MT)

    # ---- pass 2: normalize + fused QKV projection (K emitted pre-transposed) ----
    q_seq, kT_seq, v_seq = pl.pallas_call(
        _make_gn_qkv_kernel(C),
        out_shape=[jax.ShapeDtypeStruct((B, HW, C), jnp.bfloat16),
                   jax.ShapeDtypeStruct((B, C, HW), jnp.bfloat16),
                   jax.ShapeDtypeStruct((B, HW, C), jnp.bfloat16)],
        grid=(B, nm),
        in_specs=[
            pl.BlockSpec((pl.Squeezed(), tm, C), lambda b, i: (b, i, 0)),      # x
            pl.BlockSpec((pl.Squeezed(), 1, C), lambda b, i: (b, 0, 0)),       # scale
            pl.BlockSpec((pl.Squeezed(), 1, C), lambda b, i: (b, 0, 0)),       # shift
            _spec((C, 3 * C), lambda b, i: (0, 0), single_buffer=True),        # W_qkv
            _spec((1, 3 * C), lambda b, i: (0, 0), single_buffer=True),        # b_qkv
        ],
        out_specs=[
            pl.BlockSpec((pl.Squeezed(), tm, C), lambda b, i: (b, i, 0)),      # q
            pl.BlockSpec((pl.Squeezed(), C, tm), lambda b, i: (b, 0, i)),      # k^T
            pl.BlockSpec((pl.Squeezed(), tm, C), lambda b, i: (b, i, 0)),      # v
        ],
        compiler_params=cparams(("parallel", "parallel")),
    )(x_seq, scale_c, shift_c, w_qkv, b_qkv)

    # ---- pass 3: flash attention + output projection + residual ----
    if resident_kv:
        kT_spec = _spec((pl.Squeezed(), C, HW), lambda b, qi, ki: (b, 0, 0),
                        single_buffer=True)
        v_spec = _spec((pl.Squeezed(), HW, C), lambda b, qi, ki: (b, 0, 0),
                       single_buffer=True)
    else:
        kT_spec = pl.BlockSpec((pl.Squeezed(), C, tk), lambda b, qi, ki: (b, 0, ki))
        v_spec = pl.BlockSpec((pl.Squeezed(), tk, C), lambda b, qi, ki: (b, ki, 0))

    out_seq = pl.pallas_call(
        _make_flash_kernel(C, tq, tk, resident_kv),
        out_shape=jax.ShapeDtypeStruct((B, HW, C), jnp.float32),
        grid=(B, nq, nk),
        in_specs=[
            pl.BlockSpec((pl.Squeezed(), tq, C), lambda b, qi, ki: (b, qi, 0)),  # x
            pl.BlockSpec((pl.Squeezed(), tq, C), lambda b, qi, ki: (b, qi, 0)),  # q
            kT_spec, v_spec,
            _spec((C, C), lambda b, qi, ki: (0, 0), single_buffer=True),         # wp
            _spec((1, C), lambda b, qi, ki: (0, 0), single_buffer=True),         # bp
        ],
        out_specs=pl.BlockSpec((pl.Squeezed(), tq, C), lambda b, qi, ki: (b, qi, 0)),
        scratch_shapes=[
            pltpu.VMEM((tq, NUM_LANES), jnp.float32),   # running max (lane-replicated)
            pltpu.VMEM((tq, NUM_LANES), jnp.float32),   # running sum (lane-replicated)
            pltpu.VMEM((tq, C), jnp.float32),           # output accumulator
        ],
        compiler_params=cparams(("parallel", "parallel", "arbitrary")),
    )(x_seq, q_seq, kT_seq, v_seq, wp, bp)

    return jnp.transpose(out_seq.reshape(B, H, W, C), (0, 3, 1, 2))


# ---------------------------------------------------------------------------
# Pure-JAX reference mirroring the PyTorch forward (NCHW, f32)
# ---------------------------------------------------------------------------
def ref_attn_block(x, params):
    B, C, H, W = x.shape
    xr = x.reshape(B, NUM_GROUPS, C // NUM_GROUPS, H, W)
    mean = xr.mean(axis=(2, 3, 4), keepdims=True)
    var = xr.var(axis=(2, 3, 4), keepdims=True)
    hn = ((xr - mean) / jnp.sqrt(var + EPS)).reshape(B, C, H, W)
    hn = hn * params["gamma"].reshape(1, C, 1, 1) + params["beta"].reshape(1, C, 1, 1)

    def conv1x1(t, w, b):
        return jnp.einsum("bchw,oc->bohw", t, w) + b.reshape(1, -1, 1, 1)

    q = conv1x1(hn, params["wq"], params["bq"])
    k = conv1x1(hn, params["wk"], params["bk"])
    v = conv1x1(hn, params["wv"], params["bv"])
    q = jnp.transpose(q, (0, 2, 3, 1)).reshape(B, H * W, C)
    k = k.reshape(B, C, H * W)
    w = jnp.einsum("bqc,bck->bqk", q, k) * (int(C) ** (-0.5))
    w = jax.nn.softmax(w, axis=-1)
    v = jnp.transpose(v, (0, 2, 3, 1)).reshape(B, H * W, C)
    h = jnp.einsum("bqk,bkc->bqc", w, v)
    h = jnp.transpose(h.reshape(B, H, W, C), (0, 3, 1, 2))
    h = conv1x1(h, params["wp"], params["bp"])
    return x + h


def make_params(key, C):
    keys = jax.random.split(key, 8)
    s = 1.0 / math.sqrt(C)
    return {
        "gamma": jnp.ones((C,), jnp.float32),
        "beta": jnp.zeros((C,), jnp.float32),
        "wq": jax.random.normal(keys[0], (C, C), jnp.float32) * s,
        "bq": jax.random.normal(keys[1], (C,), jnp.float32) * 0.1,
        "wk": jax.random.normal(keys[2], (C, C), jnp.float32) * s,
        "bk": jax.random.normal(keys[3], (C,), jnp.float32) * 0.1,
        "wv": jax.random.normal(keys[4], (C, C), jnp.float32) * s,
        "bv": jax.random.normal(keys[5], (C,), jnp.float32) * 0.1,
        "wp": jax.random.normal(keys[6], (C, C), jnp.float32) * s,
        "bp": jax.random.normal(keys[7], (C,), jnp.float32) * 0.1,
    }


if __name__ == "__main__":
    key = jax.random.PRNGKey(0)
    kx, kp = jax.random.split(key)
    B, C, H, W = 2, 64, 16, 16        # GroupNorm(32, C) requires C % 32 == 0
    x = jax.random.normal(kx, (B, C, H, W), jnp.float32)
    params = make_params(kp, C)

    ref = jax.block_until_ready(ref_attn_block(x, params))

    # (a) resident-K/V path with multi-step online-softmax accumulation and GN stats
    #     accumulated over 2 HW tiles; (b) streamed-K/V path (and the lane-replication
    #     path with tk = 2*128).
    for resident_kv, tq, tk in ((True, 128, 128), (False, 128, 256)):
        out = jax.block_until_ready(
            attn_block(x, params, tm=128, tq=tq, tk=tk, resident_kv=resident_kv))
        assert out.shape == x.shape and out.dtype == jnp.float32
        err = float(jnp.max(jnp.abs(out - ref)))
        # bf16 MXU inputs (f32 accumulation) -> looser tolerance than a pure-f32 version
        assert jnp.allclose(out, ref, rtol=4e-2, atol=4e-2), \
            f"max err {err} (resident_kv={resident_kv})"
    print("KERNEL_OK")
</pallas_src>

<mosaic_0001>
module attributes {stable_mosaic.version = 11 : i64} {
  func.func @kernel(%arg0: i32, %arg1: i32, %arg2: memref<1x128x64xf32, #tpu.memory_space<vmem>>, %arg3: memref<1x64xf32, #tpu.memory_space<vmem>>, %arg4: memref<1x64xf32, #tpu.memory_space<vmem>>, %arg5: memref<64x32xf32, #tpu.memory_space<vmem>>, %arg6: memref<32x64xf32, #tpu.memory_space<vmem>>, %arg7: memref<1x1x64xf32, #tpu.memory_space<vmem>>, %arg8: memref<1x1x64xf32, #tpu.memory_space<vmem>>, %arg9: memref<1x64xf32, #tpu.memory_space<vmem>>, %arg10: memref<1x64xf32, #tpu.memory_space<vmem>>) attributes {dimension_semantics = [#tpu.dimension_semantics<parallel>, #tpu.dimension_semantics<arbitrary>], iteration_bounds = array<i64: 2, 2>, scalar_prefetch = 0 : i64, scratch_operands = 2 : i64, tpu.core_type = #tpu.core_type<tc>, window_params = [{transform_indices = @transform_0, window_bounds = array<i64: 1, 128, 64>}, {pipeline_mode = #tpu.pipeline_mode<synchronous>, transform_indices = @transform_1, window_bounds = array<i64: 1, 64>}, {pipeline_mode = #tpu.pipeline_mode<synchronous>, transform_indices = @transform_2, window_bounds = array<i64: 1, 64>}, {pipeline_mode = #tpu.pipeline_mode<synchronous>, transform_indices = @transform_3, window_bounds = array<i64: 64, 32>}, {pipeline_mode = #tpu.pipeline_mode<synchronous>, transform_indices = @transform_4, window_bounds = array<i64: 32, 64>}, {transform_indices = @transform_5, window_bounds = array<i64: 1, 1, 64>}, {transform_indices = @transform_6, window_bounds = array<i64: 1, 1, 64>}]} {
    %c0_i32 = arith.constant 0 : i32
    %0 = arith.cmpi eq, %arg1, %c0_i32 : i32
    %1 = arith.extui %0 : i1 to i32
    %c0_i32_0 = arith.constant 0 : i32
    %2 = arith.cmpi ne, %1, %c0_i32_0 : i32
    scf.if %2 {
      %cst_13 = arith.constant 0.000000e+00 : f32
      %19 = vector.broadcast %cst_13 : f32 to vector<1x64xf32>
      %c0_14 = arith.constant 0 : index
      %c0_15 = arith.constant 0 : index
      %20 = vector.load %arg9[%c0_14, %c0_15] : memref<1x64xf32, #tpu.memory_space<vmem>>, vector<1x64xf32>
      tpu.vector_store %arg9[%c0_14, %c0_15], %19 {strides = array<i32>} : memref<1x64xf32, #tpu.memory_space<vmem>>, vector<1x64xf32>,
      %cst_16 = arith.constant 0.000000e+00 : f32
      %21 = vector.broadcast %cst_16 : f32 to vector<1x64xf32>
      %c0_17 = arith.constant 0 : index
      %c0_18 = arith.constant 0 : index
      %22 = vector.load %arg10[%c0_17, %c0_18] : memref<1x64xf32, #tpu.memory_space<vmem>>, vector<1x64xf32>
      tpu.vector_store %arg10[%c0_17, %c0_18], %21 {strides = array<i32>} : memref<1x64xf32, #tpu.memory_space<vmem>>, vector<1x64xf32>,
    } else {
    }
    %c0 = arith.constant 0 : index
    %c0_1 = arith.constant 0 : index
    %c0_2 = arith.constant 0 : index
    %3 = vector.load %arg2[%c0, %c0_1, %c0_2] : memref<1x128x64xf32, #tpu.memory_space<vmem>>, vector<1x128x64xf32>
    %4 = vector.shape_cast %3 : vector<1x128x64xf32> to vector<128x64xf32>
    %c0_3 = arith.constant 0 : index
    %c0_4 = arith.constant 0 : index
    %5 = vector.load %arg9[%c0_3, %c0_4] : memref<1x64xf32, #tpu.memory_space<vmem>>, vector<1x64xf32>
    %cst = arith.constant dense<0.000000e+00> : vector<64xf32>
    %6 = vector.multi_reduction <add>, %4, %cst [0] : vector<128x64xf32> to vector<64xf32>
    %7 = vector.shape_cast %6 : vector<64xf32> to vector<1x64xf32>
    %8 = arith.addf %5, %7 : vector<1x64xf32>
    %c0_5 = arith.constant 0 : index
    %c0_6 = arith.constant 0 : index
    %9 = vector.load %arg9[%c0_5, %c0_6] : memref<1x64xf32, #tpu.memory_space<vmem>>, vector<1x64xf32>
    tpu.vector_store %arg9[%c0_5, %c0_6], %8 {strides = array<i32>} : memref<1x64xf32, #tpu.memory_space<vmem>>, vector<1x64xf32>,
    %c0_7 = arith.constant 0 : index
    %c0_8 = arith.constant 0 : index
    %10 = vector.load %arg10[%c0_7, %c0_8] : memref<1x64xf32, #tpu.memory_space<vmem>>, vector<1x64xf32>
    %11 = arith.mulf %4, %4 : vector<128x64xf32>
    %cst_9 = arith.constant dense<0.000000e+00> : vector<64xf32>
    %12 = vector.multi_reduction <add>, %11, %cst_9 [0] : vector<128x64xf32> to vector<64xf32>
    %13 = vector.shape_cast %12 : vector<64xf32> to vector<1x64xf32>
    %14 = arith.addf %10, %13 : vector<1x64xf32>
    %c0_10 = arith.constant 0 : index
    %c0_11 = arith.constant 0 : index
    %15 = vector.load %arg10[%c0_10, %c0_11] : memref<1x64xf32, #tpu.memory_space<vmem>>, vector<1x64xf32>
    tpu.vector_store %arg10[%c0_10, %c0_11], %14 {strides = array<i32>} : memref<1x64xf32, #tpu.memory_space<vmem>>, vector<1x64xf32>,
    %c1_i32 = arith.constant 1 : i32
    %16 = arith.cmpi eq, %arg1, %c1_i32 : i32
    %17 = arith.extui %16 : i1 to i32
    %c0_i32_12 = arith.constant 0 : i32
    %18 = arith.cmpi ne, %17, %c0_i32_12 : i32
    scf.if %18 {
      %c0_13 = arith.constant 0 : index
      %c0_14 = arith.constant 0 : index
      %19 = vector.load %arg5[%c0_13, %c0_14] : memref<64x32xf32, #tpu.memory_space<vmem>>, vector<64x32xf32>
      %c0_15 = arith.constant 0 : index
      %c0_16 = arith.constant 0 : index
      %20 = vector.load %arg9[%c0_15, %c0_16] : memref<1x64xf32, #tpu.memory_space<vmem>>, vector<1x64xf32>
      %cst_17 = arith.constant dense<0.000000e+00> : vector<1x32xf32>
      %21 = tpu.matmul %20, %19, %cst_17 {dimension_numbers = #tpu.dot_dimension_numbers<[1], [0], [0], [1], [0, 0, 1, 1], [], []>} : vector<1x64xf32>, vector<64x32xf32>, vector<1x32xf32> -> vector<1x32xf32>
      %cst_18 = arith.constant 0.001953125 : f32
      %22 = vector.broadcast %cst_18 : f32 to vector<1x32xf32>
      %23 = arith.mulf %21, %22 : vector<1x32xf32>
      %c0_19 = arith.constant 0 : index
      %c0_20 = arith.constant 0 : index
      %24 = vector.load %arg10[%c0_19, %c0_20] : memref<1x64xf32, #tpu.memory_space<vmem>>, vector<1x64xf32>
      %cst_21 = arith.constant dense<0.000000e+00> : vector<1x32xf32>
      %25 = tpu.matmul %24, %19, %cst_21 {dimension_numbers = #tpu.dot_dimension_numbers<[1], [0], [0], [1], [0, 0, 1, 1], [], []>} : vector<1x64xf32>, vector<64x32xf32>, vector<1x32xf32> -> vector<1x32xf32>
      %cst_22 = arith.constant 0.001953125 : f32
      %26 = vector.broadcast %cst_22 : f32 to vector<1x32xf32>
      %27 = arith.mulf %25, %26 : vector<1x32xf32>
      %28 = arith.mulf %23, %23 : vector<1x32xf32>
      %29 = arith.subf %27, %28 : vector<1x32xf32>
      %cst_23 = arith.constant 9.99999974E-6 : f32
      %30 = vector.broadcast %cst_23 : f32 to vector<1x32xf32>
      %31 = arith.addf %29, %30 : vector<1x32xf32>
      %32 = math.rsqrt %31 : vector<1x32xf32>
      %c0_24 = arith.constant 0 : index
      %c0_25 = arith.constant 0 : index
      %33 = vector.load %arg6[%c0_24, %c0_25] : memref<32x64xf32, #tpu.memory_space<vmem>>, vector<32x64xf32>
      %cst_26 = arith.constant dense<0.000000e+00> : vector<1x64xf32>
      %34 = tpu.matmul %23, %33, %cst_26 {dimension_numbers = #tpu.dot_dimension_numbers<[1], [0], [0], [1], [0, 0, 1, 1], [], []>} : vector<1x32xf32>, vector<32x64xf32>, vector<1x64xf32> -> vector<1x64xf32>
      %cst_27 = arith.constant dense<0.000000e+00> : vector<1x64xf32>
      %35 = tpu.matmul %32, %33, %cst_27 {dimension_numbers = #tpu.dot_dimension_numbers<[1], [0], [0], [1], [0, 0, 1, 1], [], []>} : vector<1x32xf32>, vector<32x64xf32>, vector<1x64xf32> -> vector<1x64xf32>
      %c0_28 = arith.constant 0 : index
      %c0_29 = arith.constant 0 : index
      %36 = vector.load %arg3[%c0_28, %c0_29] : memref<1x64xf32, #tpu.memory_space<vmem>>, vector<1x64xf32>
      %37 = arith.mulf %35, %36 : vector<1x64xf32>
      %c0_30 = arith.constant 0 : index
      %c0_31 = arith.constant 0 : index
      %c0_32 = arith.constant 0 : index
      %38 = vector.load %arg7[%c0_30, %c0_31, %c0_32] : memref<1x1x64xf32, #tpu.memory_space<vmem>>, vector<1x1x64xf32>
      %39 = vector.shape_cast %38 : vector<1x1x64xf32> to vector<1x64xf32>
      %40 = vector.shape_cast %37 : vector<1x64xf32> to vector<1x1x64xf32>
      tpu.vector_store %arg7[%c0_30, %c0_31, %c0_32], %40 {strides = array<i32>} : memref<1x1x64xf32, #tpu.memory_space<vmem>>, vector<1x1x64xf32>,
      %c0_33 = arith.constant 0 : index
      %c0_34 = arith.constant 0 : index
      %41 = vector.load %arg4[%c0_33, %c0_34] : memref<1x64xf32, #tpu.memory_space<vmem>>, vector<1x64xf32>
      %42 = arith.mulf %34, %37 : vector<1x64xf32>
      %43 = arith.subf %41, %42 : vector<1x64xf32>
      %c0_35 = arith.constant 0 : index
      %c0_36 = arith.constant 0 : index
      %c0_37 = arith.constant 0 : index
      %44 = vector.load %arg8[%c0_35, %c0_36, %c0_37] : memref<1x1x64xf32, #tpu.memory_space<vmem>>, vector<1x1x64xf32>
      %45 = vector.shape_cast %44 : vector<1x1x64xf32> to vector<1x64xf32>
      %46 = vector.shape_cast %43 : vector<1x64xf32> to vector<1x1x64xf32>
      tpu.vector_store %arg8[%c0_35, %c0_36, %c0_37], %46 {strides = array<i32>} : memref<1x1x64xf32, #tpu.memory_space<vmem>>, vector<1x1x64xf32>,
    } else {
    }
    return
  }
  func.func @transform_0(%arg0: i32, %arg1: i32) -> (i32, i32, i32) {
    %c0_i32 = arith.constant 0 : i32
    %c0_i32_0 = arith.constant 0 : i32
    return %arg0, %arg1, %c0_i32 : i32, i32, i32
  }
  func.func @transform_1(%arg0: i32, %arg1: i32) -> (i32, i32) {
    %c0_i32 = arith.constant 0 : i32
    %c0_i32_0 = arith.constant 0 : i32
    %c0_i32_1 = arith.constant 0 : i32
    return %c0_i32, %c0_i32_0 : i32, i32
  }
  func.func @transform_2(%arg0: i32, %arg1: i32) -> (i32, i32) {
    %c0_i32 = arith.constant 0 : i32
    %c0_i32_0 = arith.constant 0 : i32
    %c0_i32_1 = arith.constant 0 : i32
    return %c0_i32, %c0_i32_0 : i32, i32
  }
  func.func @transform_3(%arg0: i32, %arg1: i32) -> (i32, i32) {
    %c0_i32 = arith.constant 0 : i32
    %c0_i32_0 = arith.constant 0 : i32
    %c0_i32_1 = arith.constant 0 : i32
    return %c0_i32, %c0_i32_0 : i32, i32
  }
  func.func @transform_4(%arg0: i32, %arg1: i32) -> (i32, i32) {
    %c0_i32 = arith.constant 0 : i32
    %c0_i32_0 = arith.constant 0 : i32
    %c0_i32_1 = arith.constant 0 : i32
    return %c0_i32, %c0_i32_0 : i32, i32
  }
  func.func @transform_5(%arg0: i32, %arg1: i32) -> (i32, i32, i32) {
    %c0_i32 = arith.constant 0 : i32
    %c0_i32_0 = arith.constant 0 : i32
    %c0_i32_1 = arith.constant 0 : i32
    return %arg0, %c0_i32, %c0_i32_0 : i32, i32, i32
  }
  func.func @transform_6(%arg0: i32, %arg1: i32) -> (i32, i32, i32) {
    %c0_i32 = arith.constant 0 : i32
    %c0_i32_0 = arith.constant 0 : i32
    %c0_i32_1 = arith.constant 0 : i32
    return %arg0, %c0_i32, %c0_i32_0 : i32, i32, i32
  }
}

</mosaic_0001>

<llo_original>
// kernel: tpu_custom_call.1
$region0: #{tpu_custom_call.1}
  #allocation0 [shape = 'u32[]', space=smem, size = 0x4, offset = 0x4, fixed_abs, tag = 'smem constant byte address 0x4 - core index']
  #allocation1 [shape = 'u32[72,128]{1,0:T(1,128)}', space=vmem, size = 0x9000, scoped, tag = 'internal scratch']
  #allocation2 [shape = 'f32[1,64]{1,0:T(1,128)}', space=vmem, size = 0x200, scoped, tag = 'scratch operand']
  #allocation3 [shape = 'f32[1,64]{1,0:T(1,128)}', space=vmem, size = 0x200, scoped, tag = 'scratch operand']
  %s0 = inlined_call_operand.vmem [shape: f32[2,256,64], index: 0, kind: input, shape index: {}]
  %s1 = inlined_call_operand.vmem [shape: f32[1,64], index: 1, kind: input, shape index: {}]
  %s2 = inlined_call_operand.vmem [shape: f32[1,64], index: 2, kind: input, shape index: {}]
  %s3 = inlined_call_operand.vmem [shape: f32[64,32], index: 3, kind: input, shape index: {}]
  %s4 = inlined_call_operand.vmem [shape: f32[32,64], index: 4, kind: input, shape index: {}]
  %s5 = inlined_call_operand.hbm [shape: f32[2,1,64], index: 5, kind: output, shape index: {0}]
  %s6 = inlined_call_operand.hbm [shape: f32[2,1,64], index: 6, kind: output, shape index: {1}]
  %7 = xla_tuple %s5, %s6
  %s8 = sld [smem:[#allocation0]]
  $region69: #{tpu_custom_call.1} parent=0
    _
  %s10 = ssub.s32 1, %s8
  %s11 = scalar_select 0, %s10, %s8
  $region1: #{tpu_custom_call.1} parent=0
    #allocation4 [shape = 'u8[1024]{0}', space=vmem, size = 0x400, scoped, tag = 'output window, operand 0']
    #allocation5 [shape = 's32[2]{0}', space=sflag, size = 0x8, scoped, tag = 'scoped memory for tpu_custom_call.1']
    #allocation6 [shape = 'u8[1024]{0}', space=vmem, size = 0x400, scoped, tag = 'output window, operand 1']
    #allocation7 [shape = 's32[2]{0}', space=sflag, size = 0x8, scoped, tag = 'scoped memory for tpu_custom_call.1']
    %12 = vsyncpa [#allocation5], 0
    %s13 = scalar_lea.sflag [#allocation5], 1
    %14 = vsyncpa %s13, 0
    %15 = vsyncpa [#allocation7], 0
    %s16 = scalar_lea.sflag [#allocation7], 1
    %17 = vsyncpa %s16, 0
    loop: start=0, step=1, limit=6
    $region2: #{tpu_custom_call.1} parent=1 // loop_pre_header
      _
    $region3: #{tpu_custom_call.1} parent=1 // loop_header
      %s19 = sphi 0, %s23
      %p20 = scmp.ge.s32.totalorder %s19, 6
      %s26 = sphi 0, %s38
      %s27 = sphi 0, %s34
      %s28 = sphi 0, %s26
      %s29 = sphi 0, %s27
      %s30 = sphi 0, %s28
      %s31 = sphi 0, %s29
      %s43 = sphi 0, %s45
      %s46 = sphi 0, %s43
      %s47 = sphi 0, %s46
      %s63 = sphi 0, %s47
      %s67 = sphi 0, %s67
      %s69 = sphi 0, %s67
      %s70 = sphi 0, %s69
      %s84 = sphi 0, %s70
      %s88 = sphi 0, %s88
      %s90 = sphi 0, %s88
      %s91 = sphi 0, %s90
      %s105 = sphi 0, %s91
      %s109 = sphi 0, %s109
      %s111 = sphi 0, %s109
      %s112 = sphi 0, %s111
      %s126 = sphi 0, %s112
      %s130 = sphi 0, %s130
      %s132 = sphi 0, %s130
      %s133 = sphi 0, %s132
      %s147 = sphi 0, %s133
      %s153 = sphi 0, %s155
      %s156 = sphi 0, %s153
      %s157 = sphi 0, %s156
      %s173 = sphi 0, %s157
      %s179 = sphi 0, %s181
      %s182 = sphi 0, %s179
      %s183 = sphi 0, %s182
      %s199 = sphi 0, %s183
    $region4: #{tpu_custom_call.1} parent=1 // loop_header_branch
      %22 = sbr.rel (%p20) target = $region8
    $region5: #{tpu_custom_call.1} parent=1 // loop_body
      %s24 = ssub.s32 %s19, 1
      %s25 = ssub.s32 %s19, 2
      %s32 = sadd.s32 1, %s27
      %p33 = scmp.ge.s32.totalorder %s32, 2
      %s34 = scalar_select %p33, 0, %s32
      %s35 = sadd.s32 1, %s26
      %s36 = scalar_select %p33, %s35, %s26
      %p37 = scmp.ge.s32.totalorder %s36, 2
      %s38 = scalar_select %p37, 0, %s36
      %s39 = ssub.s32 %s26, %s38
      %s40 = ssub.s32 %s27, %s34
      %s41 = sor.u32 %s39, %s40
      %p42 = scmp.eq.s32.totalorder %s41, 0
      %s44 = sadd.s32 %s43, 1
      %s45 = scalar_select %p42, %s43, %s44
      %p48 = pneg %p42
      %p49 = scmp.eq.s32.totalorder %s19, 3
      %p50 = por %p48, %p49
      %p51 = scmp.ne.s32.totalorder %s43, %s46
      %p52 = scmp.eq.s32.totalorder %s19, 0
      %p53 = por %p51, %p52
      %p54 = scmp.ne.s32.totalorder %s43, %s46
      %p55 = scmp.eq.s32.totalorder %s24, 3
      %p56 = por %p54, %p55
      %p57 = scmp.ne.s32.totalorder %s46, %s47
      %p58 = scmp.eq.s32.totalorder %s24, 0
      %p59 = por %p57, %p58
      %p60 = scmp.ne.s32.totalorder %s46, %s47
      %p61 = scmp.eq.s32.totalorder %s25, 3
      %p62 = por %p60, %p61
      %p64 = scmp.ne.s32.totalorder %s47, %s63
      %p65 = scmp.eq.s32.totalorder %s25, 0
      %p66 = por %p64, %p65
      %s68 = sadd.s32 %s67, 1
      %p71 = scmp.eq.s32.totalorder %s19, 3
      %p72 = scmp.ne.s32.totalorder %s67, %s69
      %p73 = scmp.eq.s32.totalorder %s19, 0
      %p74 = por %p72, %p73
      %p75 = scmp.ne.s32.totalorder %s67, %s69
      %p76 = scmp.eq.s32.totalorder %s24, 3
      %p77 = por %p75, %p76
      %p78 = scmp.ne.s32.totalorder %s69, %s70
      %p79 = scmp.eq.s32.totalorder %s24, 0
      %p80 = por %p78, %p79
      %p81 = scmp.ne.s32.totalorder %s69, %s70
      %p82 = scmp.eq.s32.totalorder %s25, 3
      %p83 = por %p81, %p82
      %p85 = scmp.ne.s32.totalorder %s70, %s84
      %p86 = scmp.eq.s32.totalorder %s25, 0
      %p87 = por %p85, %p86
      %s89 = sadd.s32 %s88, 1
      %p92 = scmp.eq.s32.totalorder %s19, 3
      %p93 = scmp.ne.s32.totalorder %s88, %s90
      %p94 = scmp.eq.s32.totalorder %s19, 0
      %p95 = por %p93, %p94
      %p96 = scmp.ne.s32.totalorder %s88, %s90
      %p97 = scmp.eq.s32.totalorder %s24, 3
      %p98 = por %p96, %p97
      %p99 = scmp.ne.s32.totalorder %s90, %s91
      %p100 = scmp.eq.s32.totalorder %s24, 0
      %p101 = por %p99, %p100
      %p102 = scmp.ne.s32.totalorder %s90, %s91
      %p103 = scmp.eq.s32.totalorder %s25, 3
      %p104 = por %p102, %p103
      %p106 = scmp.ne.s32.totalorder %s91, %s105
      %p107 = scmp.eq.s32.totalorder %s25, 0
      %p108 = por %p106, %p107
      %s110 = sadd.s32 %s109, 1
      %p113 = scmp.eq.s32.totalorder %s19, 3
      %p114 = scmp.ne.s32.totalorder %s109, %s111
      %p115 = scmp.eq.s32.totalorder %s19, 0
      %p116 = por %p114, %p115
      %p117 = scmp.ne.s32.totalorder %s109, %s111
      %p118 = scmp.eq.s32.totalorder %s24, 3
      %p119 = por %p117, %p118
      %p120 = scmp.ne.s32.totalorder %s111, %s112
      %p121 = scmp.eq.s32.totalorder %s24, 0
      %p122 = por %p120, %p121
      %p123 = scmp.ne.s32.totalorder %s111, %s112
      %p124 = scmp.eq.s32.totalorder %s25, 3
      %p125 = por %p123, %p124
      %p127 = scmp.ne.s32.totalorder %s112, %s126
      %p128 = scmp.eq.s32.totalorder %s25, 0
      %p129 = por %p127, %p128
      %s131 = sadd.s32 %s130, 1
      %p134 = scmp.eq.s32.totalorder %s19, 3
      %p135 = scmp.ne.s32.totalorder %s130, %s132
      %p136 = scmp.eq.s32.totalorder %s19, 0
      %p137 = por %p135, %p136
      %p138 = scmp.ne.s32.totalorder %s130, %s132
      %p139 = scmp.eq.s32.totalorder %s24, 3
      %p140 = por %p138, %p139
      %p141 = scmp.ne.s32.totalorder %s132, %s133
      %p142 = scmp.eq.s32.totalorder %s24, 0
      %p143 = por %p141, %p142
      %p144 = scmp.ne.s32.totalorder %s132, %s133
      %p145 = scmp.eq.s32.totalorder %s25, 3
      %p146 = por %p144, %p145
      %p148 = scmp.ne.s32.totalorder %s133, %s147
      %p149 = scmp.eq.s32.totalorder %s25, 0
      %p150 = por %p148, %p149
      %s151 = ssub.s32 %s26, %s38
      %p152 = scmp.eq.s32.totalorder %s151, 0
      %s154 = sadd.s32 %s153, 1
      %s155 = scalar_select %p152, %s153, %s154
      %p158 = pneg %p152
      %p159 = scmp.eq.s32.totalorder %s19, 3
      %p160 = por %p158, %p159
      %p161 = scmp.ne.s32.totalorder %s153, %s156
      %p162 = scmp.eq.s32.totalorder %s19, 0
      %p163 = por %p161, %p162
      %p164 = scmp.ne.s32.totalorder %s153, %s156
      %p165 = scmp.eq.s32.totalorder %s24, 3
      %p166 = por %p164, %p165
      %p167 = scmp.ne.s32.totalorder %s156, %s157
      %p168 = scmp.eq.s32.totalorder %s24, 0
      %p169 = por %p167, %p168
      %p170 = scmp.ne.s32.totalorder %s156, %s157
      %p171 = scmp.eq.s32.totalorder %s25, 3
      %p172 = por %p170, %p171
      %p174 = scmp.ne.s32.totalorder %s157, %s173
      %p175 = scmp.eq.s32.totalorder %s25, 0
      %p176 = por %p174, %p175
      %s177 = ssub.s32 %s26, %s38
      %p178 = scmp.eq.s32.totalorder %s177, 0
      %s180 = sadd.s32 %s179, 1
      %s181 = scalar_select %p178, %s179, %s180
      %p184 = pneg %p178
      %p185 = scmp.eq.s32.totalorder %s19, 3
      %p186 = por %p184, %p185
      %p187 = scmp.ne.s32.totalorder %s179, %s182
      %p188 = scmp.eq.s32.totalorder %s19, 0
      %p189 = por %p187, %p188
      %p190 = scmp.ne.s32.totalorder %s179, %s182
      %p191 = scmp.eq.s32.totalorder %s24, 3
      %p192 = por %p190, %p191
      %p193 = scmp.ne.s32.totalorder %s182, %s183
      %p194 = scmp.eq.s32.totalorder %s24, 0
      %p195 = por %p193, %p194
      %p196 = scmp.ne.s32.totalorder %s182, %s183
      %p197 = scmp.eq.s32.totalorder %s25, 3
      %p198 = por %p196, %p197
      %p200 = scmp.ne.s32.totalorder %s183, %s199
      %p201 = scmp.eq.s32.totalorder %s25, 0
      %p202 = por %p200, %p201
      %p203 = scmp.le.s32.totalorder 1, %s19
      %p204 = scmp.lt.s32.totalorder %s19, 5
      %p205 = pnand %p203, %p204
      %p206 = pneg %p205
      // Predicated region
      $region9: #{tpu_custom_call.1} parent=5 // pred_check
        _
      $region10: #{tpu_custom_call.1} parent=5 // pred_check_branch
        %208 = sbr.rel (%p205) target = $region12
      $region11: #{tpu_custom_call.1} parent=5 // pred_region
        %s209 = ssub.s32 %s19, 1
        // Predicated region
        $region13: #{tpu_custom_call.1} parent=11 // pred_check
          %p210 = pneg %p80
        $region14: #{tpu_custom_call.1} parent=11 // pred_check_branch
          %212 = sbr.rel (%p210) target = $region16
        $region15: #{tpu_custom_call.1} parent=11 // pred_region
          _
        $region16: #{tpu_custom_call.1} parent=11 // pred_fallthru
          _
        // Predicated region
        $region17: #{tpu_custom_call.1} parent=11 // pred_check
          %p213 = pneg %p101
        $region18: #{tpu_custom_call.1} parent=11 // pred_check_branch
          %215 = sbr.rel (%p213) target = $region20
        $region19: #{tpu_custom_call.1} parent=11 // pred_region
          _
        $region20: #{tpu_custom_call.1} parent=11 // pred_fallthru
          _
        // Predicated region
        $region21: #{tpu_custom_call.1} parent=11 // pred_check
          %p216 = pneg %p122
        $region22: #{tpu_custom_call.1} parent=11 // pred_check_branch
          %218 = sbr.rel (%p216) target = $region24
        $region23: #{tpu_custom_call.1} parent=11 // pred_region
          _
        $region24: #{tpu_custom_call.1} parent=11 // pred_fallthru
          _
        // Predicated region
        $region25: #{tpu_custom_call.1} parent=11 // pred_check
          %p219 = pneg %p143
        $region26: #{tpu_custom_call.1} parent=11 // pred_check_branch
          %221 = sbr.rel (%p219) target = $region28
        $region27: #{tpu_custom_call.1} parent=11 // pred_region
          _
        $region28: #{tpu_custom_call.1} parent=11 // pred_fallthru
          _
      $region12: #{tpu_custom_call.1} parent=5 // pred_fallthru
        _
      %p222 = scmp.lt.s32.totalorder %s19, 4
      // Predicated region
      $region29: #{tpu_custom_call.1} parent=5 // pred_check
        %p223 = pneg %p222
      $region30: #{tpu_custom_call.1} parent=5 // pred_check_branch
        %225 = sbr.rel (%p223) target = $region32
      $region31: #{tpu_custom_call.1} parent=5 // pred_region
        // Predicated region
        $region33: #{tpu_custom_call.1} parent=31 // pred_check
          %p226 = pneg %p53
        $region34: #{tpu_custom_call.1} parent=31 // pred_check_branch
          %228 = sbr.rel (%p226) target = $region36
        $region35: #{tpu_custom_call.1} parent=31 // pred_region
          %s229 = smul.u32 16, %s27
          %p230 = scmp.lt.s32.totalorder %s26, 1
          %s231 = scalar_select %p230, %s26, 1
          %p232 = scmp.lt.s32.totalorder %s229, 31
          %s233 = scalar_select %p232, %s229, 31
          %s234 = smul.addr %s231, 32
          %s235 = sadd.s32 %s233, %s234
          %s236 = smul.addr %s235, 8
          %s237 = scalar_lea.vmem %s0, %s236
          %s238 = smul.u32 16, %s27
        $region36: #{tpu_custom_call.1} parent=31 // pred_fallthru
          _
      $region32: #{tpu_custom_call.1} parent=5 // pred_fallthru
        _
      %p239 = scmp.le.s32.totalorder 1, %s19
      %p240 = scmp.lt.s32.totalorder %s19, 5
      %p241 = pnand %p239, %p240
      %p242 = pneg %p241
      // Predicated region
      $region37: #{tpu_custom_call.1} parent=5 // pred_check
        _
      $region38: #{tpu_custom_call.1} parent=5 // pred_check_branch
        %244 = sbr.rel (%p241) target = $region40
      $region39: #{tpu_custom_call.1} parent=5 // pred_region
        %s245 = ssub.s32 %s19, 1
        %s246 = smul.u32 16, %s29
        %p247 = scmp.lt.s32.totalorder %s28, 1
        %s248 = scalar_select %p247, %s28, 1
        %p249 = scmp.lt.s32.totalorder %s246, 31
        %s250 = scalar_select %p249, %s246, 31
        %s251 = smul.addr %s248, 32
        %s252 = sadd.s32 %s250, %s251
        %s253 = smul.addr %s252, 8
        %s254 = scalar_lea.vmem %s0, %s253
        %p255 = pneg %p59
        %p256 = pneg %p56
        %p257 = pneg %p80
        %p258 = pneg %p77
        %p259 = pneg %p101
        %p260 = pneg %p98
        %p261 = pneg %p122
        %p262 = pneg %p119
        %p263 = pneg %p143
        %p264 = pneg %p140
        %p265 = pneg %p169
        %p266 = pneg %p166
        %s267 = sand.u32 %s156, 1
        %s268 = scalar_lea.sflag [#allocation5], %s267
        %s269 = sand.u32 %s156, 1
        %s270 = scalar_lea.vmem [#allocation4], %s269
        %p271 = pneg %p195
        %p272 = pneg %p192
        %s273 = sand.u32 %s182, 1
        %s274 = scalar_lea.sflag [#allocation7], %s273
        %s275 = sand.u32 %s182, 1
        %s276 = scalar_lea.vmem [#allocation6], %s275
        %s277 = smul.u32 16, %s29
        %p278 = scmp.lt.s32.totalorder %s28, 1
        %s279 = scalar_select %p278, %s28, 1
        %p280 = scmp.lt.s32.totalorder %s277, 31
        %s281 = scalar_select %p280, %s277, 31
        %s282 = smul.addr %s279, 32
        %s283 = sadd.s32 %s281, %s282
        %s284 = smul.addr %s283, 8
        %s285 = scalar_lea.vmem %s0, %s284
        %s286 = smul.u32 16, %s29
        %p287 = scmp.eq.s32.totalorder %s29, 0
        // Predicated region
        $region41: #{tpu_custom_call.1} parent=39 // pred_check
          %p288 = pneg %p287
        $region42: #{tpu_custom_call.1} parent=39 // pred_check_branch
          %290 = sbr.rel (%p288) target = $region44
        $region43: #{tpu_custom_call.1} parent=39 // pred_region
          %vm291 = vcmask 516096
          %292 = vst.msk [vmem:[#allocation2] sm:$0x1] %vm291, 0.0
          %293 = vst.msk [vmem:[#allocation3] sm:$0x1] %vm291, 0.0
        $region44: #{tpu_custom_call.1} parent=39 // pred_fallthru
          _
        %v294 = vld [vmem:[%s285] sm:$0xff]
        %v295 = vld [vmem:[%s285 + $0x8] sm:$0xff]
        %v296 = vld [vmem:[%s285 + $0x10] sm:$0xff]
        %v297 = vld [vmem:[%s285 + $0x18] sm:$0xff]
        %v298 = vld [vmem:[%s285 + $0x20] sm:$0xff]
        %v299 = vld [vmem:[%s285 + $0x28] sm:$0xff]
        %v300 = vld [vmem:[%s285 + $0x30] sm:$0xff]
        %v301 = vld [vmem:[%s285 + $0x38] sm:$0xff]
        %v302 = vld [vmem:[%s285 + $0x40] sm:$0xff]
        %v303 = vld [vmem:[%s285 + $0x48] sm:$0xff]
        %v304 = vld [vmem:[%s285 + $0x50] sm:$0xff]
        %v305 = vld [vmem:[%s285 + $0x58] sm:$0xff]
        %v306 = vld [vmem:[%s285 + $0x60] sm:$0xff]
        %v307 = vld [vmem:[%s285 + $0x68] sm:$0xff]
        %v308 = vld [vmem:[%s285 + $0x70] sm:$0xff]
        %v309 = vld [vmem:[%s285 + $0x78] sm:$0xff]
        %v310 = vld [vmem:[#allocation2] sm:$0x1]
        %vm311 = vcmask 523264
        %v312 = vsel %vm311, %v294, 0.0
        %v313 = vsel %vm311, %v295, 0.0
        %v314 = vadd.f32 %v312, %v313
        %v315 = vsel %vm311, %v296, 0.0
        %v316 = vadd.f32 %v314, %v315
        %v317 = vsel %vm311, %v297, 0.0
        %v318 = vadd.f32 %v316, %v317
        %v319 = vsel %vm311, %v298, 0.0
        %v320 = vadd.f32 %v318, %v319
        %v321 = vsel %vm311, %v299, 0.0
        %v322 = vadd.f32 %v320, %v321
        %v323 = vsel %vm311, %v300, 0.0
        %v324 = vadd.f32 %v322, %v323
        %v325 = vsel %vm311, %v301, 0.0
        %v326 = vadd.f32 %v324, %v325
        %v327 = vsel %vm311, %v302, 0.0
        %v328 = vadd.f32 %v326, %v327
        %v329 = vsel %vm311, %v303, 0.0
        %v330 = vadd.f32 %v328, %v329
        %v331 = vsel %vm311, %v304, 0.0
        %v332 = vadd.f32 %v330, %v331
        %v333 = vsel %vm311, %v305, 0.0
        %v334 = vadd.f32 %v332, %v333
        %v335 = vsel %vm311, %v306, 0.0
        %v336 = vadd.f32 %v334, %v335
        %v337 = vsel %vm311, %v307, 0.0
        %v338 = vadd.f32 %v336, %v337
        %v339 = vsel %vm311, %v308, 0.0
        %v340 = vadd.f32 %v338, %v339
        %v341 = vsel %vm311, %v309, 0.0
        %v342 = vadd.f32 %v340, %v341
        %v343 = vrot.slane %v342, 4
        %v344 = vadd.f32 %v342, %v343
        %v345 = vrot.slane %v344, 2
        %v346 = vadd.f32 %v344, %v345
        %v347 = vrot.slane %v346, 1
        %v348 = vadd.f32 %v346, %v347
        %v349 = vadd.f32 %v310, %v348
        %vm350 = vcmask 516096
        %351 = vst.msk [vmem:[#allocation2] sm:$0x1] %vm350, %v349
        %v352 = vld [vmem:[#allocation3] sm:$0x1]
        %v353 = vmul.f32 %v294, %v294
        %v354 = vmul.f32 %v295, %v295
        %v355 = vmul.f32 %v296, %v296
        %v356 = vmul.f32 %v297, %v297
        %v357 = vmul.f32 %v298, %v298
        %v358 = vmul.f32 %v299, %v299
        %v359 = vmul.f32 %v300, %v300
        %v360 = vmul.f32 %v301, %v301
        %v361 = vmul.f32 %v302, %v302
        %v362 = vmul.f32 %v303, %v303
        %v363 = vmul.f32 %v304, %v304
        %v364 = vmul.f32 %v305, %v305
        %v365 = vmul.f32 %v306, %v306
        %v366 = vmul.f32 %v307, %v307
        %v367 = vmul.f32 %v308, %v308
        %v368 = vmul.f32 %v309, %v309
        %v369 = vsel %vm311, %v353, 0.0
        %v370 = vsel %vm311, %v354, 0.0
        %v371 = vadd.f32 %v369, %v370
        %v372 = vsel %vm311, %v355, 0.0
        %v373 = vadd.f32 %v371, %v372
        %v374 = vsel %vm311, %v356, 0.0
        %v375 = vadd.f32 %v373, %v374
        %v376 = vsel %vm311, %v357, 0.0
        %v377 = vadd.f32 %v375, %v376
        %v378 = vsel %vm311, %v358, 0.0
        %v379 = vadd.f32 %v377, %v378
        %v380 = vsel %vm311, %v359, 0.0
        %v381 = vadd.f32 %v379, %v380
        %v382 = vsel %vm311, %v360, 0.0
        %v383 = vadd.f32 %v381, %v382
        %v384 = vsel %vm311, %v361, 0.0
        %v385 = vadd.f32 %v383, %v384
        %v386 = vsel %vm311, %v362, 0.0
        %v387 = vadd.f32 %v385, %v386
        %v388 = vsel %vm311, %v363, 0.0
        %v389 = vadd.f32 %v387, %v388
        %v390 = vsel %vm311, %v364, 0.0
        %v391 = vadd.f32 %v389, %v390
        %v392 = vsel %vm311, %v365, 0.0
        %v393 = vadd.f32 %v391, %v392
        %v394 = vsel %vm311, %v366, 0.0
        %v395 = vadd.f32 %v393, %v394
        %v396 = vsel %vm311, %v367, 0.0
        %v397 = vadd.f32 %v395, %v396
        %v398 = vsel %vm311, %v368, 0.0
        %v399 = vadd.f32 %v397, %v398
        %v400 = vrot.slane %v399, 4
        %v401 = vadd.f32 %v399, %v400
        %v402 = vrot.slane %v401, 2
        %v403 = vadd.f32 %v401, %v402
        %v404 = vrot.slane %v403, 1
        %v405 = vadd.f32 %v403, %v404
        %v406 = vadd.f32 %v352, %v405
        %407 = vst.msk [vmem:[#allocation3] sm:$0x1] %vm350, %v406
        %p408 = scmp.eq.s32.totalorder %s29, 1
        // Predicated region
        $region45: #{tpu_custom_call.1} parent=39 // pred_check
          %p409 = pneg %p408
        $region46: #{tpu_custom_call.1} parent=39 // pred_check_branch
          %411 = sbr.rel (%p409) target = $region48
        $region47: #{tpu_custom_call.1} parent=39 // pred_region
          %v412 = vld [vmem:[%s3] sm:$0xff]
          %v413 = vld [vmem:[%s3 + $0x8] sm:$0xff]
          %v414 = vld [vmem:[%s3 + $0x10] sm:$0xff]
          %v415 = vld [vmem:[%s3 + $0x18] sm:$0xff]
          %v416 = vld [vmem:[%s3 + $0x20] sm:$0xff]
          %v417 = vld [vmem:[%s3 + $0x28] sm:$0xff]
          %v418 = vld [vmem:[%s3 + $0x30] sm:$0xff]
          %v419 = vld [vmem:[%s3 + $0x38] sm:$0xff]
          %v420 = vld [vmem:[#allocation2] sm:$0x1]
          %v422 = vsel %vm311, %v420, 0
          %424 = vmatpush.msra.mxu0 0.0
          %425 = vmatpush.msra.mxu0 0.0
          %426 = vmatpush.msra.mxu0 0.0
          %427 = vmatpush.msra.mxu0 0.0
          %428 = vmatpush.msra.mxu0 0.0
          %429 = vmatpush.msra.mxu0 0.0
          %430 = vmatpush.msra.mxu0 0.0
          %431 = vmatpush.msra.mxu0 0.0
          %432 = vmatpush.msra.mxu0 %v419
          %433 = vmatpush.msra.mxu0 %v418
          %434 = vmatpush.msra.mxu0 %v417
          %435 = vmatpush.msra.mxu0 %v416
          %436 = vmatpush.msra.mxu0 %v415
          %437 = vmatpush.msra.mxu0 %v414
          %438 = vmatpush.msra.mxu0 %v413
          %439 = vmatpush.msra.mxu0 %v412
          %440 = vmatmul.f32.gmra.mxu0 %v422
          %v441 = vpop.f32.mrf.mxu0
          %v442 = vadd.f32 0.0, %v441
          %443 = vdwg.mxu0
          %v444 = vmul.f32 %v442, 0.001953125
          %v445 = vld [vmem:[#allocation3] sm:$0x1]
          %v447 = vsel %vm311, %v445, 0
          %449 = vmatpush.msra.mxu0 0.0
          %450 = vmatpush.msra.mxu0 0.0
          %451 = vmatpush.msra.mxu0 0.0
          %452 = vmatpush.msra.mxu0 0.0
          %453 = vmatpush.msra.mxu0 0.0
          %454 = vmatpush.msra.mxu0 0.0
          %455 = vmatpush.msra.mxu0 0.0
          %456 = vmatpush.msra.mxu0 0.0
          %457 = vmatpush.msra.mxu0 %v419
          %458 = vmatpush.msra.mxu0 %v418
          %459 = vmatpush.msra.mxu0 %v417
          %460 = vmatpush.msra.mxu0 %v416
          %461 = vmatpush.msra.mxu0 %v415
          %462 = vmatpush.msra.mxu0 %v414
          %463 = vmatpush.msra.mxu0 %v413
          %464 = vmatpush.msra.mxu0 %v412
          %465 = vmatmul.f32.gmra.mxu0 %v447
          %v466 = vpop.f32.mrf.mxu0
          %v467 = vadd.f32 0.0, %v466
          %468 = vdwg.mxu0
          %v469 = vmul.f32 %v467, 0.001953125
          %v470 = vmul.f32 %v444, %v444
          %v471 = vsub.f32 %v469, %v470
          %v472 = vadd.f32 %v471, 1e-05
          %v473 = vrsqrt.pop %v472
          %v474 = vmul.f32 %v473, %v472
          %v475 = vmul.f32 %v474, %v473
          %v476 = vmul.f32 0.5, %v475
          %v477 = vsub.f32 1.5, %v476
          %v478 = vmul.f32 %v473, %v477
          %vm479 = vweird.f32 %v472
          %vm480 = vweird.f32 %v473
          %vm481 = vmor %vm479, %vm480
          %v482 = vsel %vm481, %v473, %v478
          %v483 = vld [vmem:[%s4] sm:$0xff]
          %v484 = vld [vmem:[%s4 + $0x8] sm:$0xff]
          %v485 = vld [vmem:[%s4 + $0x10] sm:$0xff]
          %v486 = vld [vmem:[%s4 + $0x18] sm:$0xff]
          %vm487 = vcmask 261120
          %v489 = vsel %vm487, %v444, 0
          %491 = vmatpush.msra.mxu0 0.0
          %492 = vmatpush.msra.mxu0 0.0
          %493 = vmatpush.msra.mxu0 0.0
          %494 = vmatpush.msra.mxu0 0.0
          %495 = vmatpush.msra.mxu0 0.0
          %496 = vmatpush.msra.mxu0 0.0
          %497 = vmatpush.msra.mxu0 0.0
          %498 = vmatpush.msra.mxu0 0.0
          %499 = vmatpush.msra.mxu0 0.0
          %500 = vmatpush.msra.mxu0 0.0
          %501 = vmatpush.msra.mxu0 0.0
          %502 = vmatpush.msra.mxu0 0.0
          %503 = vmatpush.msra.mxu0 %v486
          %504 = vmatpush.msra.mxu0 %v485
          %505 = vmatpush.msra.mxu0 %v484
          %506 = vmatpush.msra.mxu0 %v483
          %507 = vmatmul.f32.gmra.mxu0 %v489
          %v508 = vpop.f32.mrf.mxu0
          %v509 = vadd.f32 0.0, %v508
          %510 = vdwg.mxu0
          %v512 = vsel %vm487, %v482, 0
          %514 = vmatpush.msra.mxu0 0.0
          %515 = vmatpush.msra.mxu0 0.0
          %516 = vmatpush.msra.mxu0 0.0
          %517 = vmatpush.msra.mxu0 0.0
          %518 = vmatpush.msra.mxu0 0.0
          %519 = vmatpush.msra.mxu0 0.0
          %520 = vmatpush.msra.mxu0 0.0
          %521 = vmatpush.msra.mxu0 0.0
          %522 = vmatpush.msra.mxu0 0.0
          %523 = vmatpush.msra.mxu0 0.0
          %524 = vmatpush.msra.mxu0 0.0
          %525 = vmatpush.msra.mxu0 0.0
          %526 = vmatpush.msra.mxu0 %v486
          %527 = vmatpush.msra.mxu0 %v485
          %528 = vmatpush.msra.mxu0 %v484
          %529 = vmatpush.msra.mxu0 %v483
          %530 = vmatmul.f32.gmra.mxu0 %v512
          %v531 = vpop.f32.mrf.mxu0
          %v532 = vadd.f32 0.0, %v531
          %533 = vdwg.mxu0
          %v534 = vld [vmem:[%s1] sm:$0x1]
          %v535 = vmul.f32 %v532, %v534
          %536 = vst.msk [vmem:[%s270] sm:$0x1] %vm350, %v535
          %v537 = vld [vmem:[%s2] sm:$0x1]
          %v538 = vmul.f32 %v509, %v535
          %v539 = vsub.f32 %v537, %v538
          %540 = vst.msk [vmem:[%s276] sm:$0x1] %vm350, %v539
        $region48: #{tpu_custom_call.1} parent=39 // pred_fallthru
          _
        %s541 = sand.u32 %s156, 1
        %s542 = scalar_lea.sflag [#allocation5], %s541
        %s543 = sand.u32 %s156, 1
        %s544 = scalar_lea.vmem [#allocation4], %s543
        %s545 = sand.u32 %s182, 1
        %s546 = scalar_lea.sflag [#allocation7], %s545
        %s547 = sand.u32 %s182, 1
        %s548 = scalar_lea.vmem [#allocation6], %s547
        // Predicated region
        $region49: #{tpu_custom_call.1} parent=39 // pred_check
          %p549 = pneg %p166
        $region50: #{tpu_custom_call.1} parent=39 // pred_check_branch
          %551 = sbr.rel (%p549) target = $region52
        $region51: #{tpu_custom_call.1} parent=39 // pred_region
          %553 = vsyncadd %s542, 0
          %s554 = scalar_lea.hbm %s5, %s28
          %s556 = sshll.u32 %s544, 4
          %s557 = int_to_ptr.vmem [resolvable:$true] %s556
          %s558 = sshll.u32 %s554, 4
          %s559 = int_to_ptr.hbm [resolvable:$true] %s558
          %561 = dma.vmem_to_hbm [thread:$0]  %s557, 16, %s559, %s542
        $region52: #{tpu_custom_call.1} parent=39 // pred_fallthru
          _
        // Predicated region
        $region53: #{tpu_custom_call.1} parent=39 // pred_check
          %p562 = pneg %p192
        $region54: #{tpu_custom_call.1} parent=39 // pred_check_branch
          %564 = sbr.rel (%p562) target = $region56
        $region55: #{tpu_custom_call.1} parent=39 // pred_region
          %566 = vsyncadd %s546, 0
          %s567 = scalar_lea.hbm %s6, %s28
          %s569 = sshll.u32 %s548, 4
          %s570 = int_to_ptr.vmem [resolvable:$true] %s569
          %s571 = sshll.u32 %s567, 4
          %s572 = int_to_ptr.hbm [resolvable:$true] %s571
          %574 = dma.vmem_to_hbm [thread:$0]  %s570, 16, %s572, %s546
        $region56: #{tpu_custom_call.1} parent=39 // pred_fallthru
          _
      $region40: #{tpu_custom_call.1} parent=5 // pred_fallthru
        _
      %p575 = scmp.le.s32.totalorder 2, %s19
      // Predicated region
      $region57: #{tpu_custom_call.1} parent=5 // pred_check
        %p576 = pneg %p575
      $region58: #{tpu_custom_call.1} parent=5 // pred_check_branch
        %578 = sbr.rel (%p576) target = $region60
      $region59: #{tpu_custom_call.1} parent=5 // pred_region
        %s579 = ssub.s32 %s19, 2
        // Predicated region
        $region61: #{tpu_custom_call.1} parent=59 // pred_check
          %p580 = pneg %p172
        $region62: #{tpu_custom_call.1} parent=59 // pred_check_branch
          %582 = sbr.rel (%p580) target = $region64
        $region63: #{tpu_custom_call.1} parent=59 // pred_region
          %s583 = sand.u32 %s157, 1
          %s584 = scalar_lea.sflag [#allocation5], %s583
          %s585 = sand.u32 %s157, 1
          %s586 = scalar_lea.vmem [#allocation4], %s585
          %588 = dma.done %s584, 16
        $region64: #{tpu_custom_call.1} parent=59 // pred_fallthru
          _
        // Predicated region
        $region65: #{tpu_custom_call.1} parent=59 // pred_check
          %p589 = pneg %p198
        $region66: #{tpu_custom_call.1} parent=59 // pred_check_branch
          %591 = sbr.rel (%p589) target = $region68
        $region67: #{tpu_custom_call.1} parent=59 // pred_region
          %s592 = sand.u32 %s183, 1
          %s593 = scalar_lea.sflag [#allocation7], %s592
          %s594 = sand.u32 %s183, 1
          %s595 = scalar_lea.vmem [#allocation6], %s594
          %597 = dma.done %s593, 16
        $region68: #{tpu_custom_call.1} parent=59 // pred_fallthru
          _
      $region60: #{tpu_custom_call.1} parent=5 // pred_fallthru
        _
    $region6: #{tpu_custom_call.1} parent=1 // loop_footer
      %s23 = sadd.s32 1, %s19
    $region7: #{tpu_custom_call.1} parent=1 // loop_footer_branch
      %18 = sbr.rel target = $region3
    $region8: #{tpu_custom_call.1} parent=1 // loop_exit
      _
    %598 = vsyncpa [#allocation5], 1
    %s599 = scalar_lea.sflag [#allocation5], 1
    %600 = vsyncpa %s599, 1
    %601 = vsyncpa [#allocation7], 1
    %s602 = scalar_lea.sflag [#allocation7], 1
    %603 = vsyncpa %s602, 1

</llo_original>
